<compile_context>
chip_gen: v6e
topology: v6e:2x2x1
jax: 0.10.0
libtpu: 0.0.40
codegen_flags: <defaults>
</compile_context>

<pallas_src>
import functools

import jax
import jax.numpy as jnp
from jax import lax
from jax.experimental import pallas as pl
from jax.experimental.pallas import tpu as pltpu


def _round_up(x, m):
    return ((x + m - 1) // m) * m


# ----------------------------------------------------------------------------
# Fused forward kernel
# ----------------------------------------------------------------------------
def _fused_kernel(labels_ref,                       # SMEM  (B,) int32
                  patches_ref,                      # VMEM  (BN_PAD, PATCH_PAD) bf16
                  ids_ref, mask_ref,                # VMEM  (BS_PAD, 1) int32 / f32
                  add_ref,                          # VMEM  (BN_PAD+BS_PAD, D_PAD) f32
                  w_big_ref,                        # VMEM  (R_W, LW) bf16 packed weights
                  b_big_ref,                        # VMEM  (8, LW) f32 packed bias/CLS rows
                  out_ref,                          # VMEM  (HEAD_ROWS, L_PAD) f32
                  h_ref,                            # VMEM scratch (TOTAL_ROWS, D_PAD) f32
                  *, B, seq, d_img, d_txt, num_labels,
                  d_pad, ff_pad, l_pad, v_pad, patch_pad,
                  bn_pad, cls_pad, bs_pad, loss_row, compute_loss):
    f32, bf16 = jnp.float32, jnp.bfloat16
    total_rows = bn_pad + cls_pad + bs_pad
    head_rows = out_ref.shape[0]

    # ---- static views into the packed parameter slabs (zero-cost slices) -----
    r_tok = patch_pad
    r_w1 = r_tok + v_pad
    r_w2 = r_w1 + d_pad
    r_wcls = r_w2 + ff_pad
    w_patch = w_big_ref[0:patch_pad, 0:d_pad]
    tok_emb = w_big_ref[r_tok:r_tok + v_pad, 0:d_pad]
    w1 = w_big_ref[r_w1:r_w1 + d_pad, 0:ff_pad]
    w2 = w_big_ref[r_w2:r_w2 + ff_pad, 0:d_pad]
    wcls = w_big_ref[r_wcls:r_wcls + d_pad, 0:l_pad]

    b1 = b_big_ref[0:1, 0:ff_pad]
    b2 = b_big_ref[1:2, 0:d_pad]
    bcls = b_big_ref[2:3, 0:l_pad]
    cls_pos0 = b_big_ref[3:4, 0:d_pad]

    add_patch = add_ref[0:bn_pad, :]
    add_txt = add_ref[bn_pad:bn_pad + bs_pad, :]

    # ---- token embeddings -----------------------------------------------------
    # image: patch pixels @ patch projection (bf16 MXU, f32 acc) + pos[1:] + bias
    patch_emb = jnp.dot(patches_ref[...], w_patch,
                        preferred_element_type=f32) + add_patch

    # image CLS rows: (cls + pos[0]) for the B real batch rows, zeros elsewhere
    cls_rows = lax.broadcasted_iota(jnp.int32, (cls_pad, d_pad), 0)
    cls_blk = jnp.where(cls_rows < B, cls_pos0, 0.0)

    # text: embedding gather as one-hot @ table (fused, no HBM gather),
    # + tiled positions, then attention-mask zeroing (stand-in semantics).
    v_lanes = lax.broadcasted_iota(jnp.int32, (bs_pad, v_pad), 1)
    onehot = (v_lanes == ids_ref[...]).astype(bf16)
    txt_emb = (jnp.dot(onehot, tok_emb, preferred_element_type=f32)
               + add_txt) * mask_ref[...]

    # ---- pack both modalities into one lane/sublane-dense slab ----------------
    #  rows [0, bn_pad)                  image patch tokens (lanes 0:d_img)
    #  rows [bn_pad, bn_pad+cls_pad)     image CLS tokens   (lanes 0:d_img)
    #  rows [bn_pad+cls_pad, total_rows) text tokens        (lanes d_img:d_img+d_txt)
    h_ref[0:bn_pad, :] = patch_emb
    h_ref[bn_pad:bn_pad + cls_pad, :] = cls_blk
    h_ref[bn_pad + cls_pad:total_rows, :] = txt_emb
    h = h_ref[...]

    # ---- shared block-diagonal MLP block (one pair of 128x128 MXU passes) -----
    y = jnp.dot(h.astype(bf16), w1, preferred_element_type=f32) + b1
    y = jax.nn.gelu(y)   # f32 (v5e-safe). NOTE: tanh approx; torch nn.GELU uses erf.
    z = jnp.dot(y.astype(bf16), w2, preferred_element_type=f32) + b2
    tokens = h + z       # residual; cross-block bias junk removed by lane masks below

    # ---- CLS extraction + concat(img, txt) in a SINGLE selection matmul -------
    # Row-dependent lane masking makes the image/text contributions lane-disjoint,
    # so one (HEAD_ROWS x TOTAL_ROWS) selection handles both modalities exactly.
    row_ids = lax.broadcasted_iota(jnp.int32, (total_rows, d_pad), 0)
    lane_ids = lax.broadcasted_iota(jnp.int32, (total_rows, d_pad), 1)
    is_txt = row_ids >= bn_pad + cls_pad
    keep = ((is_txt & (lane_ids >= d_img) & (lane_ids < d_img + d_txt))
            | ((~is_txt) & (lane_ids < d_img)))
    masked_tokens = jnp.where(keep, tokens, 0.0)

    sel_rows = lax.broadcasted_iota(jnp.int32, (head_rows, total_rows), 0)
    sel_cols = lax.broadcasted_iota(jnp.int32, (head_rows, total_rows), 1)
    valid = sel_rows < B
    sel = (valid & ((sel_cols == bn_pad + sel_rows)
                    | (sel_cols == bn_pad + cls_pad + sel_rows * seq))).astype(f32)
    feat = jnp.dot(sel, masked_tokens, preferred_element_type=f32)

    # ---- classifier head (concat feature @ W + b, one K=128 MXU push) ---------
    logits = jnp.dot(feat.astype(bf16), wcls, preferred_element_type=f32) + bcls

    if not compute_loss:
        out_ref[...] = logits
        return

    # ---- mean cross entropy over the B real rows (f32 EUP path) ---------------
    rows_l = lax.broadcasted_iota(jnp.int32, (head_rows, l_pad), 0)
    lanes_l = lax.broadcasted_iota(jnp.int32, (head_rows, l_pad), 1)
    rows_c = lax.broadcasted_iota(jnp.int32, (head_rows, 1), 0)
    masked = jnp.where(lanes_l < num_labels, logits, -1e30)
    mx = jnp.max(masked, axis=-1, keepdims=True)
    lse = mx + jnp.log(jnp.sum(jnp.exp(masked - mx), axis=-1, keepdims=True))
    loss = jnp.float32(0.0)
    for b in range(B):                       # static unroll, B is tiny
        picked = jnp.sum(jnp.where((rows_l == b) & (lanes_l == labels_ref[b]),
                                   logits, 0.0))
        row_lse = jnp.sum(jnp.where(rows_c == b, lse, 0.0))
        loss = loss + (row_lse - picked)
    loss = loss / B

    # loss folded into an unused row of the lane-dense logits tile (single vst)
    out_ref[...] = jnp.where((rows_l == loss_row) & (lanes_l == 0), loss, logits)


# ----------------------------------------------------------------------------
# Model wrapper (stand-in encoders + exact fusion head)
# ----------------------------------------------------------------------------
class MultiModalModelPallas:
    def __init__(self, key, *, img_channels=3, img_size=16, patch=8,
                 d_img=32, vocab=100, seq=8, d_txt=32, d_ff=64, num_labels=8):
        self.patch = patch
        self.n_patches = (img_size // patch) ** 2
        self.seq = seq
        self.d_img, self.d_txt, self.num_labels = d_img, d_txt, num_labels
        patch_dim = img_channels * patch * patch

        # padded / packed sizes (all lane dims -> multiples of 128)
        D = self.D_PAD = _round_up(d_img + d_txt, 128)
        F = self.FF_PAD = _round_up(2 * d_ff, 128)
        L = self.L_PAD = _round_up(num_labels, 128)
        V = self.V_PAD = _round_up(vocab, 128)
        PD = self.PATCH_PAD = _round_up(patch_dim, 128)
        LW = self.LW = max(D, F, L)
        self.R_W = PD + V + 2 * D + F

        ks = jax.random.split(key, 12)
        s = 0.02
        f32, bf16 = jnp.float32, jnp.bfloat16
        nrm = lambda k, shp: (jax.random.normal(k, shp) * s).astype(f32)

        # raw stand-in parameters (same structure as the validated version)
        w_patch = nrm(ks[0], (patch_dim, d_img)); b_patch = jnp.zeros((d_img,), f32)
        cls_img = nrm(ks[1], (1, d_img))
        pos_img = nrm(ks[2], (self.n_patches + 1, d_img))
        w_i1 = nrm(ks[3], (d_img, d_ff)); b_i1 = jnp.zeros((d_ff,), f32)
        w_i2 = nrm(ks[4], (d_ff, d_img)); b_i2 = jnp.zeros((d_img,), f32)
        tok_emb = nrm(ks[5], (vocab, d_txt))
        pos_txt = nrm(ks[6], (seq, d_txt))
        w_t1 = nrm(ks[7], (d_txt, d_ff)); b_t1 = jnp.zeros((d_ff,), f32)
        w_t2 = nrm(ks[8], (d_ff, d_txt)); b_t2 = jnp.zeros((d_txt,), f32)
        w_cls = nrm(ks[9], (d_img + d_txt, num_labels))
        b_cls = nrm(ks[10], (num_labels,))

        # ---- one-time packing: single bf16 weight slab (block-diagonal blocks)
        # rows: [w_patch | tok_emb | w1 | w2 | wcls], all lane-padded, zero-exact
        wbig = jnp.zeros((self.R_W, LW), f32)
        r = 0
        wbig = wbig.at[r:r + patch_dim, :d_img].set(w_patch); r += PD
        wbig = wbig.at[r:r + vocab, d_img:d_img + d_txt].set(tok_emb); r += V
        wbig = (wbig.at[r:r + d_img, :d_ff].set(w_i1)
                     .at[r + d_img:r + d_img + d_txt, d_ff:2 * d_ff].set(w_t1)); r += D
        wbig = (wbig.at[r:r + d_ff, :d_img].set(w_i2)
                     .at[r + d_ff:r + 2 * d_ff, d_img:d_img + d_txt].set(w_t2)); r += F
        wbig = wbig.at[r:r + d_img + d_txt, :num_labels].set(w_cls)
        self.p_wbig = wbig.astype(bf16)

        # ---- single f32 slab: row0=b1, row1=b2, row2=bcls, row3=(cls+pos[0])
        bbig = jnp.zeros((8, LW), f32)
        bbig = bbig.at[0, :d_ff].set(b_i1).at[0, d_ff:2 * d_ff].set(b_t1)
        bbig = bbig.at[1, :d_img].set(b_i2).at[1, d_img:d_img + d_txt].set(b_t2)
        bbig = bbig.at[2, :num_labels].set(b_cls)
        bbig = bbig.at[3, :d_img].set(cls_img[0] + pos_img[0])
        self.p_bbig = bbig

        # ---- padded per-token additive tensors (positions; patch bias folded in)
        self.p_pos_patch = (jnp.zeros((self.n_patches, D), f32)
                            .at[:, :d_img].set(pos_img[1:] + b_patch))
        self.p_pos_txt = (jnp.zeros((seq, D), f32)
                          .at[:, d_img:d_img + d_txt].set(pos_txt))

    def __call__(self, pixel_values, input_ids, attention_mask, labels=None):
        B, C, H, W = pixel_values.shape
        P, N, S = self.patch, self.n_patches, self.seq
        BN_PAD = _round_up(B * N, 8)
        CLS_PAD = _round_up(B, 8)
        BS_PAD = _round_up(B * S, 8)
        HEAD_ROWS = _round_up(B + 1, 8)
        TOTAL_ROWS = BN_PAD + CLS_PAD + BS_PAD
        LOSS_ROW = HEAD_ROWS - 1

        # pure layout glue: NCHW -> [B*N, C*P*P] patch rows, pad to 128-lanes, bf16
        x = pixel_values.reshape(B, C, H // P, P, W // P, P)
        x = jnp.transpose(x, (0, 2, 4, 1, 3, 5)).reshape(B * N, C * P * P)
        patches = (jnp.zeros((BN_PAD, self.PATCH_PAD), jnp.float32)
                   .at[:B * N, :C * P * P].set(x).astype(jnp.bfloat16))

        # parameter-only per-batch additive slab (constant-folded under jit):
        # rows [0, BN_PAD) patch pos+bias, rows [BN_PAD, BN_PAD+BS_PAD) text pos
        add_big = (jnp.zeros((BN_PAD + BS_PAD, self.D_PAD), jnp.float32)
                   .at[:B * N].set(jnp.tile(self.p_pos_patch, (B, 1)))
                   .at[BN_PAD:BN_PAD + B * S].set(jnp.tile(self.p_pos_txt, (B, 1))))

        ids = (jnp.zeros((BS_PAD, 1), jnp.int32)
               .at[:B * S, 0].set(input_ids.reshape(-1).astype(jnp.int32)))
        mask = (jnp.zeros((BS_PAD, 1), jnp.float32)
                .at[:B * S, 0].set(attention_mask.reshape(-1).astype(jnp.float32)))
        compute_loss = labels is not None
        lab = labels.astype(jnp.int32) if compute_loss else jnp.zeros((B,), jnp.int32)

        kernel = functools.partial(
            _fused_kernel, B=B, seq=S, d_img=self.d_img, d_txt=self.d_txt,
            num_labels=self.num_labels, d_pad=self.D_PAD, ff_pad=self.FF_PAD,
            l_pad=self.L_PAD, v_pad=self.V_PAD, patch_pad=self.PATCH_PAD,
            bn_pad=BN_PAD, cls_pad=CLS_PAD, bs_pad=BS_PAD,
            loss_row=LOSS_ROW, compute_loss=compute_loss)

        out = pl.pallas_call(
            kernel,
            out_shape=jax.ShapeDtypeStruct((HEAD_ROWS, self.L_PAD), jnp.float32),
            in_specs=([pl.BlockSpec(memory_space=pltpu.MemorySpace.SMEM)]       # labels
                      + [pl.BlockSpec(memory_space=pltpu.MemorySpace.VMEM)] * 6),
            out_specs=pl.BlockSpec(memory_space=pltpu.MemorySpace.VMEM),
            scratch_shapes=[pltpu.VMEM((TOTAL_ROWS, self.D_PAD), jnp.float32)],
            # tiny footprint (<1 MiB); explicit limit is safe on v5e/v6e/v7x
            compiler_params=pltpu.CompilerParams(vmem_limit_bytes=16 * 1024 * 1024),
        )(lab, patches, ids, mask, add_big, self.p_wbig, self.p_bbig)

        logits = out[:B, :self.num_labels]
        if compute_loss:
            return out[LOSS_ROW, 0], logits
        return logits


# ----------------------------------------------------------------------------
if __name__ == "__main__":
    key = jax.random.PRNGKey(0)
    k_model, k_px, k_ids, k_lab = jax.random.split(key, 4)

    B, C, H, W = 2, 3, 16, 16
    S, VOCAB, NUM_LABELS = 8, 100, 8

    model = MultiModalModelPallas(k_model, img_channels=C, img_size=H, patch=8,
                                  d_img=32, vocab=VOCAB, seq=S, d_txt=32,
                                  d_ff=64, num_labels=NUM_LABELS)

    pixel_values = jax.random.normal(k_px, (B, C, H, W), jnp.float32)
    input_ids = jax.random.randint(k_ids, (B, S), 0, VOCAB, jnp.int32)
    attention_mask = jnp.ones((B, S), jnp.int32)
    labels = jax.random.randint(k_lab, (B,), 0, NUM_LABELS, jnp.int32)

    fwd = jax.jit(lambda px, ids, m, lab: model(px, ids, m, lab))
    loss, logits = fwd(pixel_values, input_ids, attention_mask, labels)
    jax.block_until_ready((loss, logits))

    assert logits.shape == (B, NUM_LABELS)
    assert loss.shape == ()
    assert bool(jnp.isfinite(loss)) and bool(jnp.all(jnp.isfinite(logits)))
    print("KERNEL_OK")
</pallas_src>

<mosaic_0001>
module attributes {stable_mosaic.version = 11 : i64} {
  func.func @_fused_kernel(%arg0: memref<2xi32, #tpu.memory_space<smem>>, %arg1: memref<8x256xbf16, #tpu.memory_space<vmem>>, %arg2: memref<16x1xi32, #tpu.memory_space<vmem>>, %arg3: memref<16x1xf32, #tpu.memory_space<vmem>>, %arg4: memref<24x128xf32, #tpu.memory_space<vmem>>, %arg5: memref<768x128xbf16, #tpu.memory_space<vmem>>, %arg6: memref<8x128xf32, #tpu.memory_space<vmem>>, %arg7: memref<8x128xf32, #tpu.memory_space<vmem>>, %arg8: memref<32x128xf32, #tpu.memory_space<vmem>>) attributes {dimension_semantics = [], scalar_prefetch = 0 : i64, scratch_operands = 1 : i64, tpu.core_type = #tpu.core_type<tc>} {
    %c0 = arith.constant 0 : index
    %c0_0 = arith.constant 0 : index
    %0 = vector.load %arg5[%c0, %c0_0] : memref<768x128xbf16, #tpu.memory_space<vmem>>, vector<256x128xbf16>
    %c256 = arith.constant 256 : index
    %c0_1 = arith.constant 0 : index
    %1 = vector.load %arg5[%c256, %c0_1] : memref<768x128xbf16, #tpu.memory_space<vmem>>, vector<128x128xbf16>
    %c384 = arith.constant 384 : index
    %c0_2 = arith.constant 0 : index
    %2 = vector.load %arg5[%c384, %c0_2] : memref<768x128xbf16, #tpu.memory_space<vmem>>, vector<128x128xbf16>
    %c512 = arith.constant 512 : index
    %c0_3 = arith.constant 0 : index
    %3 = vector.load %arg5[%c512, %c0_3] : memref<768x128xbf16, #tpu.memory_space<vmem>>, vector<128x128xbf16>
    %c640 = arith.constant 640 : index
    %c0_4 = arith.constant 0 : index
    %4 = vector.load %arg5[%c640, %c0_4] : memref<768x128xbf16, #tpu.memory_space<vmem>>, vector<128x128xbf16>
    %c0_5 = arith.constant 0 : index
    %c0_6 = arith.constant 0 : index
    %5 = vector.load %arg6[%c0_5, %c0_6] : memref<8x128xf32, #tpu.memory_space<vmem>>, vector<1x128xf32>
    %c1 = arith.constant 1 : index
    %c0_7 = arith.constant 0 : index
    %6 = vector.load %arg6[%c1, %c0_7] : memref<8x128xf32, #tpu.memory_space<vmem>>, vector<1x128xf32>
    %c2 = arith.constant 2 : index
    %c0_8 = arith.constant 0 : index
    %7 = vector.load %arg6[%c2, %c0_8] : memref<8x128xf32, #tpu.memory_space<vmem>>, vector<1x128xf32>
    %c3 = arith.constant 3 : index
    %c0_9 = arith.constant 0 : index
    %8 = vector.load %arg6[%c3, %c0_9] : memref<8x128xf32, #tpu.memory_space<vmem>>, vector<1x128xf32>
    %c0_10 = arith.constant 0 : index
    %c0_11 = arith.constant 0 : index
    %9 = vector.load %arg4[%c0_10, %c0_11] : memref<24x128xf32, #tpu.memory_space<vmem>>, vector<8x128xf32>
    %c8 = arith.constant 8 : index
    %c0_12 = arith.constant 0 : index
    %10 = vector.load %arg4[%c8, %c0_12] : memref<24x128xf32, #tpu.memory_space<vmem>>, vector<16x128xf32>
    %c0_13 = arith.constant 0 : index
    %c0_14 = arith.constant 0 : index
    %11 = vector.load %arg1[%c0_13, %c0_14] : memref<8x256xbf16, #tpu.memory_space<vmem>>, vector<8x256xbf16>
    %cst = arith.constant dense<0.000000e+00> : vector<8x128xf32>
    %12 = tpu.matmul %11, %0, %cst {dimension_numbers = #tpu.dot_dimension_numbers<[1], [0], [0], [1], [0, 0, 1, 1], [], []>} : vector<8x256xbf16>, vector<256x128xbf16>, vector<8x128xf32> -> vector<8x128xf32>
    %13 = arith.addf %12, %9 : vector<8x128xf32>
    %14 = tpu.iota {dimensions = array<i32: 0>} : vector<8x128xi32>
    %c2_i32 = arith.constant 2 : i32
    %15 = vector.broadcast %c2_i32 : i32 to vector<8x128xi32>
    %16 = arith.cmpi slt, %14, %15 : vector<8x128xi32>
    %cst_15 = arith.constant 0.000000e+00 : f32
    %17 = vector.shape_cast %8 : vector<1x128xf32> to vector<1x128xf32>
    %18 = vector.broadcast %17 : vector<1x128xf32> to vector<8x128xf32>
    %19 = vector.broadcast %cst_15 : f32 to vector<8x128xf32>
    %20 = arith.select %16, %18, %19 : vector<8x128xi1>, vector<8x128xf32>
    %21 = tpu.iota {dimensions = array<i32: 1>} : vector<16x128xi32>
    %c0_16 = arith.constant 0 : index
    %c0_17 = arith.constant 0 : index
    %22 = vector.load %arg2[%c0_16, %c0_17] : memref<16x1xi32, #tpu.memory_space<vmem>>, vector<16x1xi32>
    %23 = vector.broadcast %22 : vector<16x1xi32> to vector<16x128xi32>
    %24 = arith.cmpi eq, %21, %23 : vector<16x128xi32>
    %25 = arith.extui %24 : vector<16x128xi1> to vector<16x128xi32>
    %26 = arith.sitofp %25 : vector<16x128xi32> to vector<16x128xf32>
    %27 = arith.truncf %26 : vector<16x128xf32> to vector<16x128xbf16>
    %cst_18 = arith.constant dense<0.000000e+00> : vector<16x128xf32>
    %28 = tpu.matmul %27, %1, %cst_18 {dimension_numbers = #tpu.dot_dimension_numbers<[1], [0], [0], [1], [0, 0, 1, 1], [], []>} : vector<16x128xbf16>, vector<128x128xbf16>, vector<16x128xf32> -> vector<16x128xf32>
    %29 = arith.addf %28, %10 : vector<16x128xf32>
    %c0_19 = arith.constant 0 : index
    %c0_20 = arith.constant 0 : index
    %30 = vector.load %arg3[%c0_19, %c0_20] : memref<16x1xf32, #tpu.memory_space<vmem>>, vector<16x1xf32>
    %31 = vector.broadcast %30 : vector<16x1xf32> to vector<16x128xf32>
    %32 = arith.mulf %29, %31 : vector<16x128xf32>
    %c0_21 = arith.constant 0 : index
    %c0_22 = arith.constant 0 : index
    %33 = vector.load %arg8[%c0_21, %c0_22] : memref<32x128xf32, #tpu.memory_space<vmem>>, vector<8x128xf32>
    tpu.vector_store %arg8[%c0_21, %c0_22], %13 {strides = array<i32>} : memref<32x128xf32, #tpu.memory_space<vmem>>, vector<8x128xf32>,
    %c8_23 = arith.constant 8 : index
    %c0_24 = arith.constant 0 : index
    %34 = vector.load %arg8[%c8_23, %c0_24] : memref<32x128xf32, #tpu.memory_space<vmem>>, vector<8x128xf32>
    tpu.vector_store %arg8[%c8_23, %c0_24], %20 {strides = array<i32>} : memref<32x128xf32, #tpu.memory_space<vmem>>, vector<8x128xf32>,
    %c16 = arith.constant 16 : index
    %c0_25 = arith.constant 0 : index
    %35 = vector.load %arg8[%c16, %c0_25] : memref<32x128xf32, #tpu.memory_space<vmem>>, vector<16x128xf32>
    tpu.vector_store %arg8[%c16, %c0_25], %32 {strides = array<i32>} : memref<32x128xf32, #tpu.memory_space<vmem>>, vector<16x128xf32>,
    %c0_26 = arith.constant 0 : index
    %c0_27 = arith.constant 0 : index
    %36 = vector.load %arg8[%c0_26, %c0_27] : memref<32x128xf32, #tpu.memory_space<vmem>>, vector<32x128xf32>
    %37 = arith.truncf %36 : vector<32x128xf32> to vector<32x128xbf16>
    %cst_28 = arith.constant dense<0.000000e+00> : vector<32x128xf32>
    %38 = tpu.matmul %37, %2, %cst_28 {dimension_numbers = #tpu.dot_dimension_numbers<[1], [0], [0], [1], [0, 0, 1, 1], [], []>} : vector<32x128xbf16>, vector<128x128xbf16>, vector<32x128xf32> -> vector<32x128xf32>
    %39 = vector.broadcast %5 : vector<1x128xf32> to vector<32x128xf32>
    %40 = arith.addf %38, %39 : vector<32x128xf32>
    %41 = arith.mulf %40, %40 : vector<32x128xf32>
    %42 = arith.mulf %40, %41 : vector<32x128xf32>
    %cst_29 = arith.constant 4.471500e-02 : f32
    %43 = vector.broadcast %cst_29 : f32 to vector<32x128xf32>
    %44 = arith.mulf %43, %42 : vector<32x128xf32>
    %45 = arith.addf %40, %44 : vector<32x128xf32>
    %cst_30 = arith.constant 0.797884583 : f32
    %46 = vector.broadcast %cst_30 : f32 to vector<32x128xf32>
    %47 = arith.mulf %46, %45 : vector<32x128xf32>
    %48 = math.tanh %47 : vector<32x128xf32>
    %cst_31 = arith.constant 1.000000e+00 : f32
    %49 = vector.broadcast %cst_31 : f32 to vector<32x128xf32>
    %50 = arith.addf %49, %48 : vector<32x128xf32>
    %cst_32 = arith.constant 5.000000e-01 : f32
    %51 = vector.broadcast %cst_32 : f32 to vector<32x128xf32>
    %52 = arith.mulf %51, %50 : vector<32x128xf32>
    %53 = arith.mulf %40, %52 : vector<32x128xf32>
    %54 = arith.truncf %53 : vector<32x128xf32> to vector<32x128xbf16>
    %cst_33 = arith.constant dense<0.000000e+00> : vector<32x128xf32>
    %55 = tpu.matmul %54, %3, %cst_33 {dimension_numbers = #tpu.dot_dimension_numbers<[1], [0], [0], [1], [0, 0, 1, 1], [], []>} : vector<32x128xbf16>, vector<128x128xbf16>, vector<32x128xf32> -> vector<32x128xf32>
    %56 = vector.broadcast %6 : vector<1x128xf32> to vector<32x128xf32>
    %57 = arith.addf %55, %56 : vector<32x128xf32>
    %58 = arith.addf %36, %57 : vector<32x128xf32>
    %59 = tpu.iota {dimensions = array<i32: 0>} : vector<32x128xi32>
    %60 = tpu.iota {dimensions = array<i32: 1>} : vector<32x128xi32>
    %c16_i32 = arith.constant 16 : i32
    %61 = vector.broadcast %c16_i32 : i32 to vector<32x128xi32>
    %62 = arith.cmpi sge, %59, %61 : vector<32x128xi32>
    %c32_i32 = arith.constant 32 : i32
    %63 = vector.broadcast %c32_i32 : i32 to vector<32x128xi32>
    %64 = arith.cmpi sge, %60, %63 : vector<32x128xi32>
    %65 = arith.andi %62, %64 : vector<32x128xi1>
    %c64_i32 = arith.constant 64 : i32
    %66 = vector.broadcast %c64_i32 : i32 to vector<32x128xi32>
    %67 = arith.cmpi slt, %60, %66 : vector<32x128xi32>
    %68 = arith.andi %65, %67 : vector<32x128xi1>
    %cst_34 = arith.constant dense<true> : vector<32x128xi1>
    %69 = arith.xori %62, %cst_34 : vector<32x128xi1>
    %c32_i32_35 = arith.constant 32 : i32
    %70 = vector.broadcast %c32_i32_35 : i32 to vector<32x128xi32>
    %71 = arith.cmpi slt, %60, %70 : vector<32x128xi32>
    %72 = arith.andi %69, %71 : vector<32x128xi1>
    %73 = arith.ori %68, %72 : vector<32x128xi1>
    %cst_36 = arith.constant 0.000000e+00 : f32
    %74 = vector.broadcast %cst_36 : f32 to vector<32x128xf32>
    %75 = arith.select %73, %58, %74 : vector<32x128xi1>, vector<32x128xf32>
    %76 = tpu.iota {dimensions = array<i32: 0>} : vector<8x32xi32>
    %77 = tpu.iota {dimensions = array<i32: 1>} : vector<8x32xi32>
    %c2_i32_37 = arith.constant 2 : i32
    %78 = vector.broadcast %c2_i32_37 : i32 to vector<8x32xi32>
    %79 = arith.cmpi slt, %76, %78 : vector<8x32xi32>
    %c8_i32 = arith.constant 8 : i32
    %80 = vector.broadcast %c8_i32 : i32 to vector<8x32xi32>
    %81 = arith.addi %80, %76 : vector<8x32xi32>
    %82 = arith.cmpi eq, %77, %81 : vector<8x32xi32>
    %c8_i32_38 = arith.constant 8 : i32
    %83 = vector.broadcast %c8_i32_38 : i32 to vector<8x32xi32>
    %84 = arith.muli %76, %83 : vector<8x32xi32>
    %c16_i32_39 = arith.constant 16 : i32
    %85 = vector.broadcast %c16_i32_39 : i32 to vector<8x32xi32>
    %86 = arith.addi %85, %84 : vector<8x32xi32>
    %87 = arith.cmpi eq, %77, %86 : vector<8x32xi32>
    %88 = arith.ori %82, %87 : vector<8x32xi1>
    %89 = arith.andi %79, %88 : vector<8x32xi1>
    %90 = arith.extui %89 : vector<8x32xi1> to vector<8x32xi32>
    %91 = arith.sitofp %90 : vector<8x32xi32> to vector<8x32xf32>
    %cst_40 = arith.constant dense<0.000000e+00> : vector<8x128xf32>
    %92 = tpu.matmul %91, %75, %cst_40 {dimension_numbers = #tpu.dot_dimension_numbers<[1], [0], [0], [1], [0, 0, 1, 1], [], []>} : vector<8x32xf32>, vector<32x128xf32>, vector<8x128xf32> -> vector<8x128xf32>
    %93 = arith.truncf %92 : vector<8x128xf32> to vector<8x128xbf16>
    %cst_41 = arith.constant dense<0.000000e+00> : vector<8x128xf32>
    %94 = tpu.matmul %93, %4, %cst_41 {dimension_numbers = #tpu.dot_dimension_numbers<[1], [0], [0], [1], [0, 0, 1, 1], [], []>} : vector<8x128xbf16>, vector<128x128xbf16>, vector<8x128xf32> -> vector<8x128xf32>
    %95 = vector.broadcast %7 : vector<1x128xf32> to vector<8x128xf32>
    %96 = arith.addf %94, %95 : vector<8x128xf32>
    %97 = tpu.iota {dimensions = array<i32: 0>} : vector<8x128xi32>
    %98 = tpu.iota {dimensions = array<i32: 1>} : vector<8x128xi32>
    %99 = tpu.iota {dimensions = array<i32: 0>} : vector<8x1xi32>
    %c8_i32_42 = arith.constant 8 : i32
    %100 = vector.broadcast %c8_i32_42 : i32 to vector<8x128xi32>
    %101 = arith.cmpi slt, %98, %100 : vector<8x128xi32>
    %cst_43 = arith.constant -1.000000e+30 : f32
    %102 = vector.broadcast %cst_43 : f32 to vector<8x128xf32>
    %103 = arith.select %101, %96, %102 : vector<8x128xi1>, vector<8x128xf32>
    %cst_44 = arith.constant dense<0xFF800000> : vector<8xf32>
    %104 = vector.multi_reduction <maximumf>, %103, %cst_44 [1] : vector<8x128xf32> to vector<8xf32>
    %105 = vector.shape_cast %104 : vector<8xf32> to vector<8x1xf32>
    %106 = vector.broadcast %105 : vector<8x1xf32> to vector<8x128xf32>
    %107 = arith.subf %103, %106 : vector<8x128xf32>
    %108 = math.exp %107 : vector<8x128xf32>
    %cst_45 = arith.constant dense<0.000000e+00> : vector<8xf32>
    %109 = vector.multi_reduction <add>, %108, %cst_45 [1] : vector<8x128xf32> to vector<8xf32>
    %110 = vector.shape_cast %109 : vector<8xf32> to vector<8x1xf32>
    %111 = math.log %110 : vector<8x1xf32>
    %112 = arith.addf %105, %111 : vector<8x1xf32>
    %c0_i32 = arith.constant 0 : i32
    %113 = vector.broadcast %c0_i32 : i32 to vector<8x128xi32>
    %114 = arith.cmpi eq, %97, %113 : vector<8x128xi32>
    %c0_46 = arith.constant 0 : index
    %115 = memref.load %arg0[%c0_46] : memref<2xi32, #tpu.memory_space<smem>>
    %116 = vector.broadcast %115 : i32 to vector<8x128xi32>
    %117 = arith.cmpi eq, %98, %116 : vector<8x128xi32>
    %118 = arith.andi %114, %117 : vector<8x128xi1>
    %cst_47 = arith.constant 0.000000e+00 : f32
    %119 = vector.broadcast %cst_47 : f32 to vector<8x128xf32>
    %120 = arith.select %118, %96, %119 : vector<8x128xi1>, vector<8x128xf32>
    %121 = vector.shape_cast %120 : vector<8x128xf32> to vector<1x8x128xf32>
    %cst_48 = arith.constant dense<0.000000e+00> : vector<1xf32>
    %122 = vector.multi_reduction <add>, %121, %cst_48 [1, 2] : vector<1x8x128xf32> to vector<1xf32>
    %123 = vector.shape_cast %122 : vector<1xf32> to vector<1x1x1xf32>
    %124 = vector.extract %123[0, 0, 0] : f32 from vector<1x1x1xf32>
    %c0_i32_49 = arith.constant 0 : i32
    %125 = vector.broadcast %c0_i32_49 : i32 to vector<8x1xi32>
    %126 = arith.cmpi eq, %99, %125 : vector<8x1xi32>
    %cst_50 = arith.constant 0.000000e+00 : f32
    %127 = vector.broadcast %cst_50 : f32 to vector<8x1xf32>
    %128 = arith.select %126, %112, %127 : vector<8x1xi1>, vector<8x1xf32>
    %129 = vector.shape_cast %128 : vector<8x1xf32> to vector<1x8x1xf32>
    %cst_51 = arith.constant dense<0.000000e+00> : vector<1xf32>
    %130 = vector.multi_reduction <add>, %129, %cst_51 [1, 2] : vector<1x8x1xf32> to vector<1xf32>
    %131 = vector.shape_cast %130 : vector<1xf32> to vector<1x1x1xf32>
    %132 = vector.extract %131[0, 0, 0] : f32 from vector<1x1x1xf32>
    %133 = arith.subf %132, %124 : f32
    %cst_52 = arith.constant 0.000000e+00 : f32
    %134 = arith.addf %cst_52, %133 : f32
    %c1_i32 = arith.constant 1 : i32
    %135 = vector.broadcast %c1_i32 : i32 to vector<8x128xi32>
    %136 = arith.cmpi eq, %97, %135 : vector<8x128xi32>
    %c1_53 = arith.constant 1 : index
    %137 = memref.load %arg0[%c1_53] : memref<2xi32, #tpu.memory_space<smem>>
    %138 = vector.broadcast %137 : i32 to vector<8x128xi32>
    %139 = arith.cmpi eq, %98, %138 : vector<8x128xi32>
    %140 = arith.andi %136, %139 : vector<8x128xi1>
    %cst_54 = arith.constant 0.000000e+00 : f32
    %141 = vector.broadcast %cst_54 : f32 to vector<8x128xf32>
    %142 = arith.select %140, %96, %141 : vector<8x128xi1>, vector<8x128xf32>
    %143 = vector.shape_cast %142 : vector<8x128xf32> to vector<1x8x128xf32>
    %cst_55 = arith.constant dense<0.000000e+00> : vector<1xf32>
    %144 = vector.multi_reduction <add>, %143, %cst_55 [1, 2] : vector<1x8x128xf32> to vector<1xf32>
    %145 = vector.shape_cast %144 : vector<1xf32> to vector<1x1x1xf32>
    %146 = vector.extract %145[0, 0, 0] : f32 from vector<1x1x1xf32>
    %c1_i32_56 = arith.constant 1 : i32
    %147 = vector.broadcast %c1_i32_56 : i32 to vector<8x1xi32>
    %148 = arith.cmpi eq, %99, %147 : vector<8x1xi32>
    %cst_57 = arith.constant 0.000000e+00 : f32
    %149 = vector.broadcast %cst_57 : f32 to vector<8x1xf32>
    %150 = arith.select %148, %112, %149 : vector<8x1xi1>, vector<8x1xf32>
    %151 = vector.shape_cast %150 : vector<8x1xf32> to vector<1x8x1xf32>
    %cst_58 = arith.constant dense<0.000000e+00> : vector<1xf32>
    %152 = vector.multi_reduction <add>, %151, %cst_58 [1, 2] : vector<1x8x1xf32> to vector<1xf32>
    %153 = vector.shape_cast %152 : vector<1xf32> to vector<1x1x1xf32>
    %154 = vector.extract %153[0, 0, 0] : f32 from vector<1x1x1xf32>
    %155 = arith.subf %154, %146 : f32
    %156 = arith.addf %134, %155 : f32
    %cst_59 = arith.constant 2.000000e+00 : f32
    %157 = arith.divf %156, %cst_59 : f32
    %c7_i32 = arith.constant 7 : i32
    %158 = vector.broadcast %c7_i32 : i32 to vector<8x128xi32>
    %159 = arith.cmpi eq, %97, %158 : vector<8x128xi32>
    %c0_i32_60 = arith.constant 0 : i32
    %160 = vector.broadcast %c0_i32_60 : i32 to vector<8x128xi32>
    %161 = arith.cmpi eq, %98, %160 : vector<8x128xi32>
    %162 = arith.andi %159, %161 : vector<8x128xi1>
    %163 = vector.broadcast %157 : f32 to vector<8x128xf32>
    %164 = arith.select %162, %163, %96 : vector<8x128xi1>, vector<8x128xf32>
    %c0_61 = arith.constant 0 : index
    %c0_62 = arith.constant 0 : index
    %165 = vector.load %arg7[%c0_61, %c0_62] : memref<8x128xf32, #tpu.memory_space<vmem>>, vector<8x128xf32>
    tpu.vector_store %arg7[%c0_61, %c0_62], %164 {strides = array<i32>} : memref<8x128xf32, #tpu.memory_space<vmem>>, vector<8x128xf32>,
    return
  }
}

</mosaic_0001>

<llo_original>
// kernel: _lambda_.1
$region0: #{_lambda_.1}
  #allocation0 [shape = 'u32[]', space=smem, size = 0x4, offset = 0x4, fixed_abs, tag = 'smem constant byte address 0x4 - core index']
  #allocation1 [shape = 'u32[144,128]{1,0:T(1,128)}', space=vmem, size = 0x12000, scoped, tag = 'internal scratch']
  #allocation2 [shape = 'f32[32,128]{1,0:T(8,128)}', space=vmem, size = 0x4000, scoped, tag = 'scratch operand']
  %s0 = inlined_call_operand.vmem [shape: s32[2], index: 0, kind: input, shape index: {}]
  %s1 = inlined_call_operand.vmem [shape: bf16[8,256], index: 1, kind: input, shape index: {}]
  %s2 = inlined_call_operand.vmem [shape: s32[16,1], index: 2, kind: input, shape index: {}]
  %s3 = inlined_call_operand.vmem [shape: f32[16,1], index: 3, kind: input, shape index: {}]
  %s4 = inlined_call_operand.vmem [shape: f32[24,128], index: 4, kind: input, shape index: {}]
  %s5 = inlined_call_operand.vmem [shape: bf16[768,128], index: 5, kind: input, shape index: {}]
  %s6 = inlined_call_operand.vmem [shape: f32[8,128], index: 6, kind: input, shape index: {}]
  %s7 = inlined_call_operand.vmem [shape: f32[8,128], index: 7, kind: output, shape index: {}]
  %s8 = sld [smem:[#allocation0]]
  $region42: #{_lambda_.1} parent=0
    _
  %s10 = ssub.s32 1, %s8
  %s11 = scalar_select 0, %s10, %s8
  $region1: #{_lambda_.1} parent=0
    #allocation3 [shape = 'u8[512]{0}', space=smem, size = 0x200, scoped, tag = 'input window, operand 0, single buffered']
    #allocation4 [shape = 's32[1]{0}', space=sflag, size = 0x4, scoped, tag = 'scoped memory for _lambda_.1']
    %12 = vsyncpa [#allocation4], 0
    // Predicated region
    $region2: #{_lambda_.1} parent=1 // pred_check
      _
    $region3: #{_lambda_.1} parent=1 // pred_check_branch
      %14 = sbr.rel (0) target = $region5
    $region4: #{_lambda_.1} parent=1 // pred_region
      %s16 = ssub.s32 16, 16
      %17 = vsyncadd [#allocation4], %s16
      %s19 = sshll.u32 %s0, 4
      %s20 = int_to_ptr.vmem [resolvable:$true] %s19
      %22 = dma.vmem_to_smem %s20, 16, [#allocation3], [#allocation4]
    $region5: #{_lambda_.1} parent=1 // pred_fallthru
      _
    // Predicated region
    $region6: #{_lambda_.1} parent=1 // pred_check
      _
    $region7: #{_lambda_.1} parent=1 // pred_check_branch
      %24 = sbr.rel (0) target = $region9
    $region8: #{_lambda_.1} parent=1 // pred_region
      _
    $region9: #{_lambda_.1} parent=1 // pred_fallthru
      _
    // Predicated region
    $region10: #{_lambda_.1} parent=1 // pred_check
      _
    $region11: #{_lambda_.1} parent=1 // pred_check_branch
      %26 = sbr.rel (0) target = $region13
    $region12: #{_lambda_.1} parent=1 // pred_region
      _
    $region13: #{_lambda_.1} parent=1 // pred_fallthru
      _
    // Predicated region
    $region14: #{_lambda_.1} parent=1 // pred_check
      _
    $region15: #{_lambda_.1} parent=1 // pred_check_branch
      %28 = sbr.rel (0) target = $region17
    $region16: #{_lambda_.1} parent=1 // pred_region
      _
    $region17: #{_lambda_.1} parent=1 // pred_fallthru
      _
    // Predicated region
    $region18: #{_lambda_.1} parent=1 // pred_check
      _
    $region19: #{_lambda_.1} parent=1 // pred_check_branch
      %30 = sbr.rel (0) target = $region21
    $region20: #{_lambda_.1} parent=1 // pred_region
      _
    $region21: #{_lambda_.1} parent=1 // pred_fallthru
      _
    // Predicated region
    $region22: #{_lambda_.1} parent=1 // pred_check
      _
    $region23: #{_lambda_.1} parent=1 // pred_check_branch
      %32 = sbr.rel (0) target = $region25
    $region24: #{_lambda_.1} parent=1 // pred_region
      _
    $region25: #{_lambda_.1} parent=1 // pred_fallthru
      _
    // Predicated region
    $region26: #{_lambda_.1} parent=1 // pred_check
      _
    $region27: #{_lambda_.1} parent=1 // pred_check_branch
      %34 = sbr.rel (0) target = $region29
    $region28: #{_lambda_.1} parent=1 // pred_region
      _
    $region29: #{_lambda_.1} parent=1 // pred_fallthru
      _
    // Predicated region
    $region30: #{_lambda_.1} parent=1 // pred_check
      _
    $region31: #{_lambda_.1} parent=1 // pred_check_branch
      %36 = sbr.rel (0) target = $region33
    $region32: #{_lambda_.1} parent=1 // pred_region
      %37 = dma.done [#allocation4], 16
    $region33: #{_lambda_.1} parent=1 // pred_fallthru
      _
    %38 = sfence
    %v40 = vld [vmem:[%s5] sm:$0xf]
    %v41 = vld [vmem:[%s5 + $0x4] sm:$0xf]
    %v42 = vld [vmem:[%s5 + $0x8] sm:$0xf]
    %v43 = vld [vmem:[%s5 + $0xc] sm:$0xf]
    %v44 = vld [vmem:[%s5 + $0x10] sm:$0xf]
    %v45 = vld [vmem:[%s5 + $0x14] sm:$0xf]
    %v46 = vld [vmem:[%s5 + $0x18] sm:$0xf]
    %v47 = vld [vmem:[%s5 + $0x1c] sm:$0xf]
    %v48 = vld [vmem:[%s5 + $0x20] sm:$0xf]
    %v49 = vld [vmem:[%s5 + $0x24] sm:$0xf]
    %v50 = vld [vmem:[%s5 + $0x28] sm:$0xf]
    %v51 = vld [vmem:[%s5 + $0x2c] sm:$0xf]
    %v52 = vld [vmem:[%s5 + $0x30] sm:$0xf]
    %v53 = vld [vmem:[%s5 + $0x34] sm:$0xf]
    %v54 = vld [vmem:[%s5 + $0x38] sm:$0xf]
    %v55 = vld [vmem:[%s5 + $0x3c] sm:$0xf]
    %v56 = vld [vmem:[%s5 + $0x40] sm:$0xf]
    %v57 = vld [vmem:[%s5 + $0x44] sm:$0xf]
    %v58 = vld [vmem:[%s5 + $0x48] sm:$0xf]
    %v59 = vld [vmem:[%s5 + $0x4c] sm:$0xf]
    %v60 = vld [vmem:[%s5 + $0x50] sm:$0xf]
    %v61 = vld [vmem:[%s5 + $0x54] sm:$0xf]
    %v62 = vld [vmem:[%s5 + $0x58] sm:$0xf]
    %v63 = vld [vmem:[%s5 + $0x5c] sm:$0xf]
    %v64 = vld [vmem:[%s5 + $0x60] sm:$0xf]
    %v65 = vld [vmem:[%s5 + $0x64] sm:$0xf]
    %v66 = vld [vmem:[%s5 + $0x68] sm:$0xf]
    %v67 = vld [vmem:[%s5 + $0x6c] sm:$0xf]
    %v68 = vld [vmem:[%s5 + $0x70] sm:$0xf]
    %v69 = vld [vmem:[%s5 + $0x74] sm:$0xf]
    %v70 = vld [vmem:[%s5 + $0x78] sm:$0xf]
    %v71 = vld [vmem:[%s5 + $0x7c] sm:$0xf]
    %v72 = vld [vmem:[%s5 + $0x80] sm:$0xf]
    %v73 = vld [vmem:[%s5 + $0x84] sm:$0xf]
    %v74 = vld [vmem:[%s5 + $0x88] sm:$0xf]
    %v75 = vld [vmem:[%s5 + $0x8c] sm:$0xf]
    %v76 = vld [vmem:[%s5 + $0x90] sm:$0xf]
    %v77 = vld [vmem:[%s5 + $0x94] sm:$0xf]
    %v78 = vld [vmem:[%s5 + $0x98] sm:$0xf]
    %v79 = vld [vmem:[%s5 + $0x9c] sm:$0xf]
    %v80 = vld [vmem:[%s5 + $0xa0] sm:$0xf]
    %v81 = vld [vmem:[%s5 + $0xa4] sm:$0xf]
    %v82 = vld [vmem:[%s5 + $0xa8] sm:$0xf]
    %v83 = vld [vmem:[%s5 + $0xac] sm:$0xf]
    %v84 = vld [vmem:[%s5 + $0xb0] sm:$0xf]
    %v85 = vld [vmem:[%s5 + $0xb4] sm:$0xf]
    %v86 = vld [vmem:[%s5 + $0xb8] sm:$0xf]
    %v87 = vld [vmem:[%s5 + $0xbc] sm:$0xf]
    %v88 = vld [vmem:[%s5 + $0xc0] sm:$0xf]
    %v89 = vld [vmem:[%s5 + $0xc4] sm:$0xf]
    %v90 = vld [vmem:[%s5 + $0xc8] sm:$0xf]
    %v91 = vld [vmem:[%s5 + $0xcc] sm:$0xf]
    %v92 = vld [vmem:[%s5 + $0xd0] sm:$0xf]
    %v93 = vld [vmem:[%s5 + $0xd4] sm:$0xf]
    %v94 = vld [vmem:[%s5 + $0xd8] sm:$0xf]
    %v95 = vld [vmem:[%s5 + $0xdc] sm:$0xf]
    %v96 = vld [vmem:[%s5 + $0xe0] sm:$0xf]
    %v97 = vld [vmem:[%s5 + $0xe4] sm:$0xf]
    %v98 = vld [vmem:[%s5 + $0xe8] sm:$0xf]
    %v99 = vld [vmem:[%s5 + $0xec] sm:$0xf]
    %v100 = vld [vmem:[%s5 + $0xf0] sm:$0xf]
    %v101 = vld [vmem:[%s5 + $0xf4] sm:$0xf]
    %v102 = vld [vmem:[%s5 + $0xf8] sm:$0xf]
    %v103 = vld [vmem:[%s5 + $0xfc] sm:$0xf]
    %v104 = vld [vmem:[%s5 + $0x100] sm:$0xf]
    %v105 = vld [vmem:[%s5 + $0x104] sm:$0xf]
    %v106 = vld [vmem:[%s5 + $0x108] sm:$0xf]
    %v107 = vld [vmem:[%s5 + $0x10c] sm:$0xf]
    %v108 = vld [vmem:[%s5 + $0x110] sm:$0xf]
    %v109 = vld [vmem:[%s5 + $0x114] sm:$0xf]
    %v110 = vld [vmem:[%s5 + $0x118] sm:$0xf]
    %v111 = vld [vmem:[%s5 + $0x11c] sm:$0xf]
    %v112 = vld [vmem:[%s5 + $0x120] sm:$0xf]
    %v113 = vld [vmem:[%s5 + $0x124] sm:$0xf]
    %v114 = vld [vmem:[%s5 + $0x128] sm:$0xf]
    %v115 = vld [vmem:[%s5 + $0x12c] sm:$0xf]
    %v116 = vld [vmem:[%s5 + $0x130] sm:$0xf]
    %v117 = vld [vmem:[%s5 + $0x134] sm:$0xf]
    %v118 = vld [vmem:[%s5 + $0x138] sm:$0xf]
    %v119 = vld [vmem:[%s5 + $0x13c] sm:$0xf]
    %v120 = vld [vmem:[%s5 + $0x140] sm:$0xf]
    %v121 = vld [vmem:[%s5 + $0x144] sm:$0xf]
    %v122 = vld [vmem:[%s5 + $0x148] sm:$0xf]
    %v123 = vld [vmem:[%s5 + $0x14c] sm:$0xf]
    %v124 = vld [vmem:[%s5 + $0x150] sm:$0xf]
    %v125 = vld [vmem:[%s5 + $0x154] sm:$0xf]
    %v126 = vld [vmem:[%s5 + $0x158] sm:$0xf]
    %v127 = vld [vmem:[%s5 + $0x15c] sm:$0xf]
    %v128 = vld [vmem:[%s5 + $0x160] sm:$0xf]
    %v129 = vld [vmem:[%s5 + $0x164] sm:$0xf]
    %v130 = vld [vmem:[%s5 + $0x168] sm:$0xf]
    %v131 = vld [vmem:[%s5 + $0x16c] sm:$0xf]
    %v132 = vld [vmem:[%s5 + $0x170] sm:$0xf]
    %v133 = vld [vmem:[%s5 + $0x174] sm:$0xf]
    %v134 = vld [vmem:[%s5 + $0x178] sm:$0xf]
    %v135 = vld [vmem:[%s5 + $0x17c] sm:$0xf]
    %v136 = vld [vmem:[%s6] sm:$0x1]
    %v137 = vld [vmem:[%s6 + $0x1] sm:$0x1]
    %v138 = vld [vmem:[%s6 + $0x2] sm:$0x1]
    %v139 = vld [vmem:[%s6 + $0x3] sm:$0x1]
    %v140 = vld [vmem:[%s4] sm:$0xff]
    %v141 = vld [vmem:[%s4 + $0x8] sm:$0xff]
    %v142 = vld [vmem:[%s4 + $0x10] sm:$0xff]
    %v143 = vld [vmem:[%s1] sm:$0xff]
    %v145 = vunpack.c.l.b16 %v143
    %v146 = vunpack.c.h.b16 %v143
    %v147 = vpack.c.b16 %v145, %v145
    %v148 = vpack.c.b16 %v146, %v146
    %v183 = vunpack.c.l.b16 %v40
    %v184 = vunpack.c.l.b16 %v41
    %v185 = vunpack.c.l.b16 %v42
    %v186 = vunpack.c.l.b16 %v43
    %v187 = vunpack.c.l.b16 %v44
    %v188 = vunpack.c.l.b16 %v45
    %v189 = vunpack.c.l.b16 %v46
    %v190 = vunpack.c.l.b16 %v47
    %v191 = vunpack.c.l.b16 %v48
    %v192 = vunpack.c.l.b16 %v49
    %v193 = vunpack.c.l.b16 %v50
    %v194 = vunpack.c.l.b16 %v51
    %v195 = vunpack.c.l.b16 %v52
    %v196 = vunpack.c.l.b16 %v53
    %v197 = vunpack.c.l.b16 %v54
    %v198 = vunpack.c.l.b16 %v55
    %v199 = vunpack.c.l.b16 %v56
    %v200 = vunpack.c.l.b16 %v57
    %v201 = vunpack.c.l.b16 %v58
    %v202 = vunpack.c.l.b16 %v59
    %v203 = vunpack.c.l.b16 %v60
    %v204 = vunpack.c.l.b16 %v61
    %v205 = vunpack.c.l.b16 %v62
    %v206 = vunpack.c.l.b16 %v63
    %v207 = vunpack.c.l.b16 %v64
    %v208 = vunpack.c.l.b16 %v65
    %v209 = vunpack.c.l.b16 %v66
    %v210 = vunpack.c.l.b16 %v67
    %v211 = vunpack.c.l.b16 %v68
    %v212 = vunpack.c.l.b16 %v69
    %v213 = vunpack.c.l.b16 %v70
    %v214 = vunpack.c.l.b16 %v71
    %v215 = vpack.c.b16 %v184, %v183
    %v216 = vpack.c.b16 %v186, %v185
    %v217 = vpack.c.b16 %v188, %v187
    %v218 = vpack.c.b16 %v190, %v189
    %v219 = vpack.c.b16 %v192, %v191
    %v220 = vpack.c.b16 %v194, %v193
    %v221 = vpack.c.b16 %v196, %v195
    %v222 = vpack.c.b16 %v198, %v197
    %v223 = vpack.c.b16 %v200, %v199
    %v224 = vpack.c.b16 %v202, %v201
    %v225 = vpack.c.b16 %v204, %v203
    %v226 = vpack.c.b16 %v206, %v205
    %v227 = vpack.c.b16 %v208, %v207
    %v228 = vpack.c.b16 %v210, %v209
    %v229 = vpack.c.b16 %v212, %v211
    %v230 = vpack.c.b16 %v214, %v213
    %247 = vmatprep.subr.bf16.mxu0 0
    %248 = vmatpush1.bf16.msra.mxu0 %v222
    %249 = vmatprep.subr.bf16.mxu0 0
    %250 = vmatpush1.bf16.msra.mxu0 %v221
    %251 = vmatprep.subr.bf16.mxu0 0
    %252 = vmatpush1.bf16.msra.mxu0 %v220
    %253 = vmatprep.subr.bf16.mxu0 0
    %254 = vmatpush1.bf16.msra.mxu0 %v219
    %255 = vmatprep.subr.bf16.mxu0 0
    %256 = vmatpush1.bf16.msra.mxu0 %v218
    %257 = vmatprep.subr.bf16.mxu0 0
    %258 = vmatpush1.bf16.msra.mxu0 %v217
    %259 = vmatprep.subr.bf16.mxu0 0
    %260 = vmatpush1.bf16.msra.mxu0 %v216
    %261 = vmatprep.subr.bf16.mxu0 0
    %262 = vmatpush1.bf16.msra.mxu0 %v215
    %263 = vmatprep.subr.bf16.mxu0 0
    %264 = vmatpush2.bf16.msra.mxu0 %v230
    %265 = vmatprep.subr.bf16.mxu0 0
    %266 = vmatpush2.bf16.msra.mxu0 %v229
    %267 = vmatprep.subr.bf16.mxu0 0
    %268 = vmatpush2.bf16.msra.mxu0 %v228
    %269 = vmatprep.subr.bf16.mxu0 0
    %270 = vmatpush2.bf16.msra.mxu0 %v227
    %271 = vmatprep.subr.bf16.mxu0 0
    %272 = vmatpush2.bf16.msra.mxu0 %v226
    %273 = vmatprep.subr.bf16.mxu0 0
    %274 = vmatpush2.bf16.msra.mxu0 %v225
    %275 = vmatprep.subr.bf16.mxu0 0
    %276 = vmatpush2.bf16.msra.mxu0 %v224
    %277 = vmatprep.subr.bf16.mxu0 0
    %278 = vmatpush2.bf16.msra.mxu0 %v223
    %279 = vmatprep.mubr.bf16.mxu0 %v148
    %280 = vmatmul.mubr.bf16.gmra.mxu0 %v147
    %v281 = vpop.f32.mrf.mxu0
    %v282 = vadd.f32 %v140, %v281
    %v283 = vpop.f32.mrf.mxu0
    %v284 = vpop.f32.mrf.mxu0
    %v285 = vpop.f32.mrf.mxu0
    %286 = vdwg.mxu0
    %v287 = vlaneseq
    %v288 = vshrl.u32 %v287, 7
    %vm289 = vcmp.lt.s32.totalorder %v288, 2
    %v290 = vlaneseq
    %v291 = vshrl.u32 %v290, 7
    %v292 = vsub.s32 0, %v291
    %v293 = vrot.slane %v139, %v292
    %v294 = vsel %vm289, %v293, 0.0
    %v295 = vlaneseq
    %v296 = vand.u32 %v295, 127
    %v297 = vld [vmem:[%s2] sm:$0xff]
    %v298 = vld [vmem:[%s2 + $0x8] sm:$0xff]
    %299 = vset.pattern.permute.xlu0 0
    %300 = vperm.xlu0 %299, %v297
    %v301 = vpop.permute.xlu0 %300
    %302 = vset.pattern.permute.xlu0 0
    %303 = vperm.xlu0 %302, %v298
    %v304 = vpop.permute.xlu0 %303
    %vm305 = vcmp.eq.s32.totalorder %v296, %v301
    %vm306 = vcmp.eq.s32.totalorder %v296, %v304
    %v307 = vsel %vm305, 1, 0
    %v308 = vsel %vm306, 1, 0
    %v309 = vcvt.s32.f32 %v307
    %v310 = vcvt.s32.f32 %v308
    %v311 = vpack.c.bf16 %v310, %v309
    %v328 = vunpack.c.l.b16 %v72
    %v329 = vunpack.c.l.b16 %v73
    %v330 = vunpack.c.l.b16 %v74
    %v331 = vunpack.c.l.b16 %v75
    %v332 = vunpack.c.l.b16 %v76
    %v333 = vunpack.c.l.b16 %v77
    %v334 = vunpack.c.l.b16 %v78
    %v335 = vunpack.c.l.b16 %v79
    %v336 = vunpack.c.l.b16 %v80
    %v337 = vunpack.c.l.b16 %v81
    %v338 = vunpack.c.l.b16 %v82
    %v339 = vunpack.c.l.b16 %v83
    %v340 = vunpack.c.l.b16 %v84
    %v341 = vunpack.c.l.b16 %v85
    %v342 = vunpack.c.l.b16 %v86
    %v343 = vunpack.c.l.b16 %v87
    %v344 = vpack.c.b16 %v329, %v328
    %v345 = vpack.c.b16 %v331, %v330
    %v346 = vpack.c.b16 %v333, %v332
    %v347 = vpack.c.b16 %v335, %v334
    %v348 = vpack.c.b16 %v337, %v336
    %v349 = vpack.c.b16 %v339, %v338
    %v350 = vpack.c.b16 %v341, %v340
    %v351 = vpack.c.b16 %v343, %v342
    %360 = vmatprep.subr.bf16.mxu0 0
    %361 = vmatpush1.bf16.msra.mxu0 %v351
    %362 = vmatprep.subr.bf16.mxu0 0
    %363 = vmatpush1.bf16.msra.mxu0 %v350
    %364 = vmatprep.subr.bf16.mxu0 0
    %365 = vmatpush1.bf16.msra.mxu0 %v349
    %366 = vmatprep.subr.bf16.mxu0 0
    %367 = vmatpush1.bf16.msra.mxu0 %v348
    %368 = vmatprep.subr.bf16.mxu0 0
    %369 = vmatpush1.bf16.msra.mxu0 %v347
    %370 = vmatprep.subr.bf16.mxu0 0
    %371 = vmatpush1.bf16.msra.mxu0 %v346
    %372 = vmatprep.subr.bf16.mxu0 0
    %373 = vmatpush1.bf16.msra.mxu0 %v345
    %374 = vmatprep.subr.bf16.mxu0 0
    %375 = vmatpush1.bf16.msra.mxu0 %v344
    %376 = vmatprep.subr.bf16.mxu0 0
    %377 = vmatpush2.bf16.msra.mxu0 0
    %378 = vmatprep.subr.bf16.mxu0 0
    %379 = vmatpush2.bf16.msra.mxu0 0
    %380 = vmatprep.subr.bf16.mxu0 0
    %381 = vmatpush2.bf16.msra.mxu0 0
    %382 = vmatprep.subr.bf16.mxu0 0
    %383 = vmatpush2.bf16.msra.mxu0 0
    %384 = vmatprep.subr.bf16.mxu0 0
    %385 = vmatpush2.bf16.msra.mxu0 0
    %386 = vmatprep.subr.bf16.mxu0 0
    %387 = vmatpush2.bf16.msra.mxu0 0
    %388 = vmatprep.subr.bf16.mxu0 0
    %389 = vmatpush2.bf16.msra.mxu0 0
    %390 = vmatprep.subr.bf16.mxu0 0
    %391 = vmatpush2.bf16.msra.mxu0 0
    %392 = vmatprep.mubr.bf16.mxu0 0
    %393 = vmatmul.mubr.bf16.gmra.mxu0 %v311
    %v394 = vpop.f32.mrf.mxu0
    %v395 = vadd.f32 %v141, %v394
    %v396 = vpop.f32.mrf.mxu0
    %v397 = vpop.f32.mrf.mxu0
    %v398 = vadd.f32 %v142, %v397
    %v399 = vpop.f32.mrf.mxu0
    %400 = vdwg.mxu0
    %v401 = vld [vmem:[%s3] sm:$0xff]
    %v402 = vld [vmem:[%s3 + $0x8] sm:$0xff]
    %404 = vset.pattern.permute.xlu0 0
    %405 = vperm.xlu0 %404, %v401
    %v406 = vpop.permute.xlu0 %405
    %409 = vset.pattern.permute.xlu0 0
    %410 = vperm.xlu0 %409, %v402
    %v411 = vpop.permute.xlu0 %410
    %v413 = vmul.f32 %v395, %v406
    %v414 = vmul.f32 %v398, %v411
    %415 = vst [vmem:[#allocation2] sm:$0xff] %v282
    %416 = vst [vmem:[#allocation2 + $0x8] sm:$0xff] %v294
    %417 = vst [vmem:[#allocation2 + $0x10] sm:$0xff] %v413
    %418 = vst [vmem:[#allocation2 + $0x18] sm:$0xff] %v414
    %v419 = vld [vmem:[#allocation2] sm:$0xff]
    %v420 = vld [vmem:[#allocation2 + $0x8] sm:$0xff]
    %v421 = vld [vmem:[#allocation2 + $0x10] sm:$0xff]
    %v422 = vld [vmem:[#allocation2 + $0x18] sm:$0xff]
    %v423 = vpack.c.bf16 %v420, %v419
    %v424 = vpack.c.bf16 %v422, %v421
    %v425 = vlaneseq
    %v426 = vshrl.u32 %v425, 7
    %v427 = vsub.s32 0, %v426
    %v428 = vrot.slane %v136, %v427
    %v445 = vunpack.c.l.b16 %v88
    %v446 = vunpack.c.l.b16 %v89
    %v447 = vunpack.c.l.b16 %v90
    %v448 = vunpack.c.l.b16 %v91
    %v449 = vunpack.c.l.b16 %v92
    %v450 = vunpack.c.l.b16 %v93
    %v451 = vunpack.c.l.b16 %v94
    %v452 = vunpack.c.l.b16 %v95
    %v453 = vunpack.c.l.b16 %v96
    %v454 = vunpack.c.l.b16 %v97
    %v455 = vunpack.c.l.b16 %v98
    %v456 = vunpack.c.l.b16 %v99
    %v457 = vunpack.c.l.b16 %v100
    %v458 = vunpack.c.l.b16 %v101
    %v459 = vunpack.c.l.b16 %v102
    %v460 = vunpack.c.l.b16 %v103
    %v461 = vpack.c.b16 %v446, %v445
    %v462 = vpack.c.b16 %v448, %v447
    %v463 = vpack.c.b16 %v450, %v449
    %v464 = vpack.c.b16 %v452, %v451
    %v465 = vpack.c.b16 %v454, %v453
    %v466 = vpack.c.b16 %v456, %v455
    %v467 = vpack.c.b16 %v458, %v457
    %v468 = vpack.c.b16 %v460, %v459
    %477 = vmatprep.subr.bf16.mxu0 0
    %478 = vmatpush1.bf16.msra.mxu0 %v468
    %479 = vmatprep.subr.bf16.mxu0 0
    %480 = vmatpush1.bf16.msra.mxu0 %v467
    %481 = vmatprep.subr.bf16.mxu0 0
    %482 = vmatpush1.bf16.msra.mxu0 %v466
    %483 = vmatprep.subr.bf16.mxu0 0
    %484 = vmatpush1.bf16.msra.mxu0 %v465
    %485 = vmatprep.subr.bf16.mxu0 0
    %486 = vmatpush1.bf16.msra.mxu0 %v464
    %487 = vmatprep.subr.bf16.mxu0 0
    %488 = vmatpush1.bf16.msra.mxu0 %v463
    %489 = vmatprep.subr.bf16.mxu0 0
    %490 = vmatpush1.bf16.msra.mxu0 %v462
    %491 = vmatprep.subr.bf16.mxu0 0
    %492 = vmatpush1.bf16.msra.mxu0 %v461
    %493 = vmatprep.subr.bf16.mxu0 0
    %494 = vmatpush2.bf16.msra.mxu0 0
    %495 = vmatprep.subr.bf16.mxu0 0
    %496 = vmatpush2.bf16.msra.mxu0 0
    %497 = vmatprep.subr.bf16.mxu0 0
    %498 = vmatpush2.bf16.msra.mxu0 0
    %499 = vmatprep.subr.bf16.mxu0 0
    %500 = vmatpush2.bf16.msra.mxu0 0
    %501 = vmatprep.subr.bf16.mxu0 0
    %502 = vmatpush2.bf16.msra.mxu0 0
    %503 = vmatprep.subr.bf16.mxu0 0
    %504 = vmatpush2.bf16.msra.mxu0 0
    %505 = vmatprep.subr.bf16.mxu0 0
    %506 = vmatpush2.bf16.msra.mxu0 0
    %507 = vmatprep.subr.bf16.mxu0 0
    %508 = vmatpush2.bf16.msra.mxu0 0
    %509 = vmatprep.mubr.bf16.mxu0 0
    %510 = vmatmul.mubr.bf16.gmra.mxu0 %v423
    %v511 = vpop.f32.mrf.mxu0
    %v512 = vadd.f32 %v428, %v511
    %v513 = vpop.f32.mrf.mxu0
    %v514 = vpop.f32.mrf.mxu0
    %v515 = vadd.f32 %v428, %v514
    %v516 = vpop.f32.mrf.mxu0
    %517 = vmatprep.mubr.bf16.mxu0 0
    %518 = vmatmul.mubr.bf16.gmra.mxu0 %v424
    %v519 = vpop.f32.mrf.mxu0
    %v520 = vadd.f32 %v428, %v519
    %v521 = vpop.f32.mrf.mxu0
    %v522 = vpop.f32.mrf.mxu0
    %v523 = vadd.f32 %v428, %v522
    %v524 = vpop.f32.mrf.mxu0
    %525 = vdwg.mxu0
    %v526 = vmul.f32 %v512, %v512
    %v527 = vmul.f32 %v515, %v515
    %v528 = vmul.f32 %v520, %v520
    %v529 = vmul.f32 %v523, %v523
    %v530 = vmul.f32 %v512, %v526
    %v531 = vmul.f32 %v515, %v527
    %v532 = vmul.f32 %v520, %v528
    %v533 = vmul.f32 %v523, %v529
    %v534 = vmul.f32 %v530, 0.044715
    %v535 = vmul.f32 %v531, 0.044715
    %v536 = vmul.f32 %v532, 0.044715
    %v537 = vmul.f32 %v533, 0.044715
    %v538 = vadd.f32 %v512, %v534
    %v539 = vadd.f32 %v515, %v535
    %v540 = vadd.f32 %v520, %v536
    %v541 = vadd.f32 %v523, %v537
    %v542 = vmul.f32 %v538, 0.7978846
    %v543 = vmul.f32 %v539, 0.7978846
    %v544 = vmul.f32 %v540, 0.7978846
    %v545 = vmul.f32 %v541, 0.7978846
    %v546 = vtanh.pop %v542
    %v547 = vtanh.pop %v543
    %v548 = vtanh.pop %v544
    %v549 = vtanh.pop %v545
    %v550 = vadd.f32 %v546, 1.0
    %v551 = vadd.f32 %v547, 1.0
    %v552 = vadd.f32 %v548, 1.0
    %v553 = vadd.f32 %v549, 1.0
    %v554 = vmul.f32 %v550, 0.5
    %v555 = vmul.f32 %v551, 0.5
    %v556 = vmul.f32 %v552, 0.5
    %v557 = vmul.f32 %v553, 0.5
    %v558 = vmul.f32 %v512, %v554
    %v559 = vmul.f32 %v515, %v555
    %v560 = vmul.f32 %v520, %v556
    %v561 = vmul.f32 %v523, %v557
    %v562 = vpack.c.bf16 %v559, %v558
    %v563 = vpack.c.bf16 %v561, %v560
    %v564 = vlaneseq
    %v565 = vshrl.u32 %v564, 7
    %v566 = vsub.s32 0, %v565
    %v567 = vrot.slane %v137, %v566
    %v584 = vunpack.c.l.b16 %v104
    %v585 = vunpack.c.l.b16 %v105
    %v586 = vunpack.c.l.b16 %v106
    %v587 = vunpack.c.l.b16 %v107
    %v588 = vunpack.c.l.b16 %v108
    %v589 = vunpack.c.l.b16 %v109
    %v590 = vunpack.c.l.b16 %v110
    %v591 = vunpack.c.l.b16 %v111
    %v592 = vunpack.c.l.b16 %v112
    %v593 = vunpack.c.l.b16 %v113
    %v594 = vunpack.c.l.b16 %v114
    %v595 = vunpack.c.l.b16 %v115
    %v596 = vunpack.c.l.b16 %v116
    %v597 = vunpack.c.l.b16 %v117
    %v598 = vunpack.c.l.b16 %v118
    %v599 = vunpack.c.l.b16 %v119
    %v600 = vpack.c.b16 %v585, %v584
    %v601 = vpack.c.b16 %v587, %v586
    %v602 = vpack.c.b16 %v589, %v588
    %v603 = vpack.c.b16 %v591, %v590
    %v604 = vpack.c.b16 %v593, %v592
    %v605 = vpack.c.b16 %v595, %v594
    %v606 = vpack.c.b16 %v597, %v596
    %v607 = vpack.c.b16 %v599, %v598
    %616 = vmatprep.subr.bf16.mxu0 0
    %617 = vmatpush1.bf16.msra.mxu0 %v607
    %618 = vmatprep.subr.bf16.mxu0 0
    %619 = vmatpush1.bf16.msra.mxu0 %v606
    %620 = vmatprep.subr.bf16.mxu0 0
    %621 = vmatpush1.bf16.msra.mxu0 %v605
    %622 = vmatprep.subr.bf16.mxu0 0
    %623 = vmatpush1.bf16.msra.mxu0 %v604
    %624 = vmatprep.subr.bf16.mxu0 0
    %625 = vmatpush1.bf16.msra.mxu0 %v603
    %626 = vmatprep.subr.bf16.mxu0 0
    %627 = vmatpush1.bf16.msra.mxu0 %v602
    %628 = vmatprep.subr.bf16.mxu0 0
    %629 = vmatpush1.bf16.msra.mxu0 %v601
    %630 = vmatprep.subr.bf16.mxu0 0
    %631 = vmatpush1.bf16.msra.mxu0 %v600
    %632 = vmatprep.subr.bf16.mxu0 0
    %633 = vmatpush2.bf16.msra.mxu0 0
    %634 = vmatprep.subr.bf16.mxu0 0
    %635 = vmatpush2.bf16.msra.mxu0 0
    %636 = vmatprep.subr.bf16.mxu0 0
    %637 = vmatpush2.bf16.msra.mxu0 0
    %638 = vmatprep.subr.bf16.mxu0 0
    %639 = vmatpush2.bf16.msra.mxu0 0
    %640 = vmatprep.subr.bf16.mxu0 0
    %641 = vmatpush2.bf16.msra.mxu0 0
    %642 = vmatprep.subr.bf16.mxu0 0
    %643 = vmatpush2.bf16.msra.mxu0 0
    %644 = vmatprep.subr.bf16.mxu0 0
    %645 = vmatpush2.bf16.msra.mxu0 0
    %646 = vmatprep.subr.bf16.mxu0 0
    %647 = vmatpush2.bf16.msra.mxu0 0
    %648 = vmatprep.mubr.bf16.mxu0 0
    %649 = vmatmul.mubr.bf16.gmra.mxu0 %v562
    %v650 = vpop.f32.mrf.mxu0
    %v651 = vadd.f32 %v567, %v650
    %v652 = vpop.f32.mrf.mxu0
    %v653 = vpop.f32.mrf.mxu0
    %v654 = vadd.f32 %v567, %v653
    %v655 = vpop.f32.mrf.mxu0
    %656 = vmatprep.mubr.bf16.mxu0 0
    %657 = vmatmul.mubr.bf16.gmra.mxu0 %v563
    %v658 = vpop.f32.mrf.mxu0
    %v659 = vadd.f32 %v567, %v658
    %v660 = vpop.f32.mrf.mxu0
    %v661 = vpop.f32.mrf.mxu0
    %v662 = vadd.f32 %v567, %v661
    %v663 = vpop.f32.mrf.mxu0
    %664 = vdwg.mxu0
    %v665 = vadd.f32 %v419, %v651
    %v666 = vadd.f32 %v420, %v654
    %v667 = vadd.f32 %v421, %v659
    %v668 = vadd.f32 %v422, %v662
    %v669 = vadd.s32 %v288, 8
    %v670 = vadd.s32 %v288, 16
    %v671 = vadd.s32 %v288, 24
    %vm672 = vcmp.ge.s32.totalorder %v288, 16
    %vm673 = vcmp.ge.s32.totalorder %v669, 16
    %vm674 = vcmp.ge.s32.totalorder %v670, 16
    %vm675 = vcmp.ge.s32.totalorder %v671, 16
    %vm676 = vcmp.ge.s32.totalorder %v296, 32
    %vm677 = vmand %vm672, %vm676
    %vm678 = vmand %vm673, %vm676
    %vm679 = vmand %vm674, %vm676
    %vm680 = vmand %vm675, %vm676
    %vm681 = vcmp.lt.s32.totalorder %v296, 64
    %vm682 = vmand %vm677, %vm681
    %vm683 = vmand %vm678, %vm681
    %vm684 = vmand %vm679, %vm681
    %vm685 = vmand %vm680, %vm681
    %vm686 = vmxor %vm672, 1
    %vm687 = vmxor %vm673, 1
    %vm688 = vmxor %vm674, 1
    %vm689 = vmxor %vm675, 1
    %vm690 = vcmp.lt.s32.totalorder %v296, 32
    %vm691 = vmand %vm686, %vm690
    %vm692 = vmand %vm687, %vm690
    %vm693 = vmand %vm688, %vm690
    %vm694 = vmand %vm689, %vm690
    %vm695 = vmor %vm682, %vm691
    %vm696 = vmor %vm683, %vm692
    %vm697 = vmor %vm684, %vm693
    %vm698 = vmor %vm685, %vm694
    %v699 = vsel %vm695, %v665, 0.0
    %v700 = vsel %vm696, %v666, 0.0
    %v701 = vsel %vm697, %v667, 0.0
    %v702 = vsel %vm698, %v668, 0.0
    %vm703 = vcmp.eq.s32.totalorder %v296, %v669
    %v704 = vmul.u32 %v288, 8
    %v705 = vadd.s32 %v704, 16
    %vm706 = vcmp.eq.s32.totalorder %v296, %v705
    %vm707 = vmor %vm703, %vm706
    %vm708 = vmand %vm289, %vm707
    %v709 = vsel %vm708, 1, 0
    %v710 = vcvt.s32.f32 %v709
    %vm711 = vcmask 261120
    %v713 = vsel %vm711, %v710, 0
    %715 = vmatprep.subr.mxu0 0.0
    %716 = vmatpush1.msra.mxu0 0.0
    %717 = vmatprep.subr.mxu0 0.0
    %718 = vmatpush1.msra.mxu0 0.0
    %719 = vmatprep.subr.mxu0 0.0
    %720 = vmatpush1.msra.mxu0 0.0
    %721 = vmatprep.subr.mxu0 0.0
    %722 = vmatpush1.msra.mxu0 0.0
    %723 = vmatprep.subr.mxu0 0.0
    %724 = vmatpush1.msra.mxu0 0.0
    %725 = vmatprep.subr.mxu0 0.0
    %726 = vmatpush1.msra.mxu0 0.0
    %727 = vmatprep.subr.mxu0 0.0
    %728 = vmatpush1.msra.mxu0 0.0
    %729 = vmatprep.subr.mxu0 0.0
    %730 = vmatpush1.msra.mxu0 0.0
    %731 = vmatprep.subr.mxu0 0.0
    %732 = vmatpush1.msra.mxu0 0.0
    %733 = vmatprep.subr.mxu0 0.0
    %734 = vmatpush1.msra.mxu0 0.0
    %735 = vmatprep.subr.mxu0 0.0
    %736 = vmatpush1.msra.mxu0 0.0
    %737 = vmatprep.subr.mxu0 0.0
    %738 = vmatpush1.msra.mxu0 0.0
    %739 = vmatprep.subr.mxu0 0.0
    %740 = vmatpush1.msra.mxu0 %v702
    %741 = vmatprep.subr.mxu0 0.0
    %742 = vmatpush1.msra.mxu0 %v701
    %743 = vmatprep.subr.mxu0 0.0
    %744 = vmatpush1.msra.mxu0 %v700
    %745 = vmatprep.subr.mxu0 0.0
    %746 = vmatpush1.msra.mxu0 %v699
    %747 = vmatprep.subr.mxu0 0.0
    %748 = vmatpush2.msra.mxu0 0.0
    %749 = vmatprep.subr.mxu0 0.0
    %750 = vmatpush2.msra.mxu0 0.0
    %751 = vmatprep.subr.mxu0 0.0
    %752 = vmatpush2.msra.mxu0 0.0
    %753 = vmatprep.subr.mxu0 0.0
    %754 = vmatpush2.msra.mxu0 0.0
    %755 = vmatprep.subr.mxu0 0.0
    %756 = vmatpush2.msra.mxu0 0.0
    %757 = vmatprep.subr.mxu0 0.0
    %758 = vmatpush2.msra.mxu0 0.0
    %759 = vmatprep.subr.mxu0 0.0
    %760 = vmatpush2.msra.mxu0 0.0
    %761 = vmatprep.subr.mxu0 0.0
    %762 = vmatpush2.msra.mxu0 0.0
    %763 = vmatprep.subr.mxu0 0.0
    %764 = vmatpush2.msra.mxu0 0.0
    %765 = vmatprep.subr.mxu0 0.0
    %766 = vmatpush2.msra.mxu0 0.0
    %767 = vmatprep.subr.mxu0 0.0
    %768 = vmatpush2.msra.mxu0 0.0
    %769 = vmatprep.subr.mxu0 0.0
    %770 = vmatpush2.msra.mxu0 0.0
    %771 = vmatprep.subr.mxu0 0.0
    %772 = vmatpush2.msra.mxu0 0.0
    %773 = vmatprep.subr.mxu0 0.0
    %774 = vmatpush2.msra.mxu0 0.0
    %775 = vmatprep.subr.mxu0 0.0
    %776 = vmatpush2.msra.mxu0 0.0
    %777 = vmatprep.subr.mxu0 0.0
    %778 = vmatpush2.msra.mxu0 0.0
    %779 = vmatprep.mubr.f32.mxu0 0.0
    %780 = vmatmul.mubr.f32.gmra.mxu0 %v713
    %v781 = vpop.f32.mrf.mxu0
    %v782 = vadd.f32 0.0, %v781
    %v783 = vpop.f32.mrf.mxu0
    %784 = vdwg.mxu0
    %v785 = vpack.c.bf16 %v782, %v782
    %v786 = vlaneseq
    %v787 = vshrl.u32 %v786, 7
    %v788 = vsub.s32 0, %v787
    %v789 = vrot.slane %v138, %v788
    %v806 = vunpack.c.l.b16 %v120
    %v807 = vunpack.c.l.b16 %v121
    %v808 = vunpack.c.l.b16 %v122
    %v809 = vunpack.c.l.b16 %v123
    %v810 = vunpack.c.l.b16 %v124
    %v811 = vunpack.c.l.b16 %v125
    %v812 = vunpack.c.l.b16 %v126
    %v813 = vunpack.c.l.b16 %v127
    %v814 = vunpack.c.l.b16 %v128
    %v815 = vunpack.c.l.b16 %v129
    %v816 = vunpack.c.l.b16 %v130
    %v817 = vunpack.c.l.b16 %v131
    %v818 = vunpack.c.l.b16 %v132
    %v819 = vunpack.c.l.b16 %v133
    %v820 = vunpack.c.l.b16 %v134
    %v821 = vunpack.c.l.b16 %v135
    %v822 = vpack.c.b16 %v807, %v806
    %v823 = vpack.c.b16 %v809, %v808
    %v824 = vpack.c.b16 %v811, %v810
    %v825 = vpack.c.b16 %v813, %v812
    %v826 = vpack.c.b16 %v815, %v814
    %v827 = vpack.c.b16 %v817, %v816
    %v828 = vpack.c.b16 %v819, %v818
    %v829 = vpack.c.b16 %v821, %v820
    %838 = vmatprep.subr.bf16.mxu0 0
    %839 = vmatpush1.bf16.msra.mxu0 %v829
    %840 = vmatprep.subr.bf16.mxu0 0
    %841 = vmatpush1.bf16.msra.mxu0 %v828
    %842 = vmatprep.subr.bf16.mxu0 0
    %843 = vmatpush1.bf16.msra.mxu0 %v827
    %844 = vmatprep.subr.bf16.mxu0 0
    %845 = vmatpush1.bf16.msra.mxu0 %v826
    %846 = vmatprep.subr.bf16.mxu0 0
    %847 = vmatpush1.bf16.msra.mxu0 %v825
    %848 = vmatprep.subr.bf16.mxu0 0
    %849 = vmatpush1.bf16.msra.mxu0 %v824
    %850 = vmatprep.subr.bf16.mxu0 0
    %851 = vmatpush1.bf16.msra.mxu0 %v823
    %852 = vmatprep.subr.bf16.mxu0 0
    %853 = vmatpush1.bf16.msra.mxu0 %v822
    %854 = vmatprep.subr.bf16.mxu0 0
    %855 = vmatpush2.bf16.msra.mxu0 0
    %856 = vmatprep.subr.bf16.mxu0 0
    %857 = vmatpush2.bf16.msra.mxu0 0
    %858 = vmatprep.subr.bf16.mxu0 0
    %859 = vmatpush2.bf16.msra.mxu0 0
    %860 = vmatprep.subr.bf16.mxu0 0
    %861 = vmatpush2.bf16.msra.mxu0 0
    %862 = vmatprep.subr.bf16.mxu0 0
    %863 = vmatpush2.bf16.msra.mxu0 0
    %864 = vmatprep.subr.bf16.mxu0 0
    %865 = vmatpush2.bf16.msra.mxu0 0
    %866 = vmatprep.subr.bf16.mxu0 0
    %867 = vmatpush2.bf16.msra.mxu0 0
    %868 = vmatprep.subr.bf16.mxu0 0
    %869 = vmatpush2.bf16.msra.mxu0 0
    %870 = vmatprep.mubr.bf16.mxu0 0
    %871 = vmatmul.mubr.bf16.gmra.mxu0 %v785
    %v872 = vpop.f32.mrf.mxu0
    %v873 = vadd.f32 %v789, %v872
    %v874 = vpop.f32.mrf.mxu0
    %v875 = vpop.f32.mrf.mxu0
    %v876 = vpop.f32.mrf.mxu0
    %877 = vdwg.mxu0
    %vm878 = vcmp.lt.s32.totalorder %v296, 8
    %v879 = vsel %vm878, %v873, -1e+30
    %880 = vmax.xlane.f32.xlu0 %v879
    %v881 = vpop.xlane.xlu0 %880
    %v882 = vsub.f32 %v879, %v881
    %v883 = vmul.f32 %v882, 1.442695
    %v884 = vpow.pop %v883
    %885 = vadd.xlane.f32.xlu0 %v884
    %v886 = vpop.xlane.xlu0 %885
    %v887 = vlog2.pop %v886
    %v888 = vmul.f32 %v887, 0.6931472
    %v889 = vadd.f32 %v881, %v888
    %vm890 = vcmp.eq.s32.totalorder %v288, 0
    %s891 = sld [smem:[#allocation3]]
    %v892 = vstv %s891
    %vm893 = vcmp.eq.s32.totalorder %v296, %v892
    %vm894 = vmand %vm890, %vm893
    %v895 = vsel %vm894, %v873, 0.0
    %896 = vadd.xlane.f32.xlu0 %v895
    %v897 = vpop.xlane.xlu0 %896
    %v898 = vrot.slane %v897, 4
    %v899 = vadd.f32 %v897, %v898
    %v900 = vrot.slane %v899, 2
    %v901 = vadd.f32 %v899, %v900
    %v902 = vrot.slane %v901, 1
    %v903 = vadd.f32 %v901, %v902
    %s904 = vtos %v903
    %v905 = vsel %vm890, %v889, 0.0
    %vm906 = vcmask 7168
    %v907 = vsel %vm906, %v905, 0.0
    %908 = vadd.xlane.f32.xlu0 %v907
    %v909 = vpop.xlane.xlu0 %908
    %v910 = vrot.slane %v909, 4
    %v911 = vadd.f32 %v909, %v910
    %v912 = vrot.slane %v911, 2
    %v913 = vadd.f32 %v911, %v912
    %v914 = vrot.slane %v913, 1
    %v915 = vadd.f32 %v913, %v914
    %s916 = vtos %v915
    %s917 = ssub.f32 %s916, %s904
    %s918 = sadd.f32 %s917, 0.0
    %vm919 = vcmp.eq.s32.totalorder %v288, 1
    %s920 = sld [smem:[#allocation3 + $0x1]]
    %v921 = vstv %s920
    %vm922 = vcmp.eq.s32.totalorder %v296, %v921
    %vm923 = vmand %vm919, %vm922
    %v924 = vsel %vm923, %v873, 0.0
    %925 = vadd.xlane.f32.xlu0 %v924
    %v926 = vpop.xlane.xlu0 %925
    %v927 = vrot.slane %v926, 4
    %v928 = vadd.f32 %v926, %v927
    %v929 = vrot.slane %v928, 2
    %v930 = vadd.f32 %v928, %v929
    %v931 = vrot.slane %v930, 1
    %v932 = vadd.f32 %v930, %v931
    %s933 = vtos %v932
    %v934 = vsel %vm919, %v889, 0.0
    %v935 = vsel %vm906, %v934, 0.0
    %936 = vadd.xlane.f32.xlu0 %v935
    %v937 = vpop.xlane.xlu0 %936
    %v938 = vrot.slane %v937, 4
    %v939 = vadd.f32 %v937, %v938
    %v940 = vrot.slane %v939, 2
    %v941 = vadd.f32 %v939, %v940
    %v942 = vrot.slane %v941, 1
    %v943 = vadd.f32 %v941, %v942
    %s944 = vtos %v943
    %s945 = ssub.f32 %s944, %s933
    %s946 = sadd.f32 %s918, %s945
    %v947 = vrcp.pop 2.0
    %s948 = vtos %v947
    %s949 = smul.f32 %s946, %s948
    %vm950 = vcmp.eq.s32.totalorder %v288, 7
    %vm951 = vcmp.eq.s32.totalorder %v296, 0
    %vm952 = vmand %vm950, %vm951
    %v953 = vstv %s949
    %v954 = vsel %vm952, %v953, %v873
    %955 = vst [vmem:[%s7] sm:$0xff] %v954
    // Predicated region
    $region34: #{_lambda_.1} parent=1 // pred_check
      _
    $region35: #{_lambda_.1} parent=1 // pred_check_branch
      %957 = sbr.rel (0) target = $region37
    $region36: #{_lambda_.1} parent=1 // pred_region
      _
    $region37: #{_lambda_.1} parent=1 // pred_fallthru
      _
    // Predicated region
    $region38: #{_lambda_.1} parent=1 // pred_check
      _
    $region39: #{_lambda_.1} parent=1 // pred_check_branch
      %959 = sbr.rel (0) target = $region41
    $region40: #{_lambda_.1} parent=1 // pred_region
      _
    $region41: #{_lambda_.1} parent=1 // pred_fallthru
      _
    %960 = vsyncpa [#allocation4], 1

</llo_original>
